<compile_context>
chip_gen: v5e
topology: v5e:2x2
jax: 0.10.0
libtpu: 0.0.40
codegen_flags: <defaults>
</compile_context>

<pallas_src>
import functools
import math

import jax
import jax.numpy as jnp
from jax.experimental import pallas as pl
from jax.experimental.pallas import tpu as pltpu


# --------------------------------------------------------------------------- #
# Kernel 1: Q/K/V projection, one (batch, seq-tile) per grid step              #
# --------------------------------------------------------------------------- #
def _qkv_proj_kernel(num_heads, d_key,
                     q_ref, k_ref, v_ref,
                     wq_ref, bq_ref, wk_ref, bk_ref, wv_ref, bv_ref,
                     qh_ref, kh_ref, vh_ref):
    """Block views:
      q_ref/k_ref/v_ref : (1, ts, E)                 input embeddings
      w*_ref            : (E, d_model)               full weights (VMEM-resident)
      b*_ref            : (1, d_model)
      *h_ref (outputs)  : (1, H, ts, d_key)          head-major Q/K/V
    Wq/bq are pre-scaled by 1/sqrt(d_key) host-side (scale folded into Q).
    """
    xq = q_ref[0]
    xk = k_ref[0]
    xv = v_ref[0]
    yq = (jnp.dot(xq, wq_ref[...], preferred_element_type=jnp.float32)
          + bq_ref[...]).astype(qh_ref.dtype)
    yk = (jnp.dot(xk, wk_ref[...], preferred_element_type=jnp.float32)
          + bk_ref[...]).astype(kh_ref.dtype)
    yv = (jnp.dot(xv, wv_ref[...], preferred_element_type=jnp.float32)
          + bv_ref[...]).astype(vh_ref.dtype)
    # Static per-head split/store into the head-major layout (unrolled).
    for h in range(num_heads):
        cols = slice(h * d_key, (h + 1) * d_key)
        qh_ref[0, h] = yq[:, cols]
        kh_ref[0, h] = yk[:, cols]
        vh_ref[0, h] = yv[:, cols]


# --------------------------------------------------------------------------- #
# Kernel 2: attention + output projection, one (batch, q-tile, head) per step  #
# --------------------------------------------------------------------------- #
def _attn_kernel(num_heads, has_mask, write_probs, kv_resident, *refs):
    """Grid = (B, Tq, H); H innermost ("arbitrary") so the output projection is
    accumulated across heads into acc_ref (resident f32 VMEM scratch).

    Block views (kv_resident=True layout):
      q_ref    : (1, 1, tq, d_key)    pre-scaled Q tile (per head)
      k_ref    : (1, H, S, d_key)     all heads, index depends only on batch
      v_ref    : (1, H, S, d_key)
      m_ref    : (1, tq, S)           mask (present iff has_mask), 0 == masked
      wo_ref   : (H, d_key, E)        full output-projection weight (resident)
      bo_ref   : (1, E)
      out_ref  : (1, tq, E)           resident across the head axis
      prob_ref : (1, 1, tq, S)        attention probabilities (iff write_probs)
      acc_ref  : (tq, E) f32 VMEM scratch
    """
    it = iter(refs)
    q_ref = next(it)
    k_ref = next(it)
    v_ref = next(it)
    m_ref = next(it) if has_mask else None
    wo_ref = next(it)
    bo_ref = next(it)
    out_ref = next(it)
    prob_ref = next(it) if write_probs else None
    acc_ref = next(it)

    h = pl.program_id(2)

    q = q_ref[0, 0]                              # (tq, d_key), 1/sqrt(d_key)-scaled
    if kv_resident:
        k = k_ref[0, h]                          # (S, d_key)
        v = v_ref[0, h]                          # (S, d_key)
    else:
        k = k_ref[0, 0]
        v = v_ref[0, 0]

    # scores = Q_scaled @ K^T  (contract d_key of both operands)
    scores = jax.lax.dot_general(
        q, k, dimension_numbers=(((1,), (1,)), ((), ())),
        preferred_element_type=jnp.float32)      # (tq, S) f32

    if has_mask:
        # masked_fill(mask == 0, -1e10)
        scores = jnp.where(m_ref[0] == 0, jnp.float32(-1e10), scores)

    # numerically stable softmax; exact reciprocal (probs are a module output)
    s_max = jnp.max(scores, axis=-1, keepdims=True)
    p = jnp.exp(scores - s_max)
    denom = jnp.sum(p, axis=-1, keepdims=True)
    probs = p * pl.reciprocal(denom)             # (tq, S) f32, exact
    if write_probs:
        prob_ref[0, 0] = probs.astype(prob_ref.dtype)

    # context and this head's contribution to the output projection
    ctx = jnp.dot(probs.astype(v.dtype), v,
                  preferred_element_type=jnp.float32)        # (tq, d_key)
    contrib = jnp.dot(ctx.astype(wo_ref.dtype), wo_ref[h],
                      preferred_element_type=jnp.float32)    # (tq, E)

    @pl.when(h == 0)
    def _():
        acc_ref[...] = jnp.broadcast_to(
            bo_ref[...].astype(jnp.float32), acc_ref.shape)

    acc_ref[...] += contrib

    @pl.when(h == num_heads - 1)
    def _():
        out_ref[0] = acc_ref[...].astype(out_ref.dtype)


# --------------------------------------------------------------------------- #
# Wrapper                                                                      #
# --------------------------------------------------------------------------- #
def _tpu_vmem_capacity():
    try:
        info = pltpu.get_tpu_info()
        for name in ("vmem_capacity_bytes", "vmem_bytes", "vmem_size_bytes"):
            v = getattr(info, name, None)
            if v:
                return int(v)
    except Exception:
        pass
    return 64 << 20      # conservative (v7x-sized) fallback


def _pick_tile(dim, preferred):
    if dim <= preferred:
        return dim
    for t in (512, 256, 128, 64, 32, 16, 8):
        if t <= preferred and dim % t == 0:
            return t
    return dim


def _vmem_limit(step_bytes, budget):
    est = int(step_bytes) + (8 << 20)            # headroom for compiler scratch
    return int(max(32 << 20, min(est, budget)))


def multi_head_attention(query_embed, key_embed, value_embed, mask, params,
                         num_heads, *, q_tile=None, s_tile=None,
                         return_probs=True, probs_dtype=None):
    """Pallas TPU implementation of the PyTorch MultiHeadAttention forward."""
    B, S, E = query_embed.shape
    d_model = params['wq'].shape[1]
    assert d_model % num_heads == 0
    d_key = d_model // num_heads
    act_dtype = query_embed.dtype
    isz = jnp.dtype(act_dtype).itemsize
    w_dtype = params['wq'].dtype
    w_isz = jnp.dtype(w_dtype).itemsize
    if probs_dtype is None:
        probs_dtype = act_dtype
    probs_isz = jnp.dtype(probs_dtype).itemsize

    # ---- per-generation budgets (v7x: 64 MiB/TC, v5e/v6e: 128 MiB) -----------
    cap = _tpu_vmem_capacity()
    budget = int(0.85 * cap)
    preferred_tile = 512 if cap >= (100 << 20) else 256

    # ---- host-side (one-time) weight massaging --------------------------------
    # Fold 1/sqrt(d_key) into the Q projection in f32, then cast back.
    scale = 1.0 / math.sqrt(d_key)
    wq_s = (params['wq'].astype(jnp.float32) * scale).astype(w_dtype)
    bq_s = (params['bq'].astype(jnp.float32) * scale).astype(w_dtype).reshape(1, d_model)
    wk = params['wk']
    bk = params['bk'].reshape(1, d_model)
    wv = params['wv']
    bv = params['bv'].reshape(1, d_model)
    wo_h = params['wo'].reshape(num_heads, d_key, E)
    bo_r = params['bo'].reshape(1, E)

    # Mask: use the caller-provided dtype directly (no dense conversion pass).
    has_mask = mask is not None
    if has_mask:
        mask_arr = mask.astype(jnp.int8) if mask.dtype == jnp.bool_ else mask
        mask_isz = jnp.dtype(mask_arr.dtype).itemsize
    else:
        mask_arr = None
        mask_isz = 0

    # ---- tile sizes ------------------------------------------------------------
    if s_tile is None:
        s_tile = _pick_tile(S, preferred_tile)
    if q_tile is None:
        q_tile = _pick_tile(S, preferred_tile)

    # K/V residency for call 2: all-heads blocks (double-buffered) if they fit.
    kv_resident_bytes = 2 * 2 * num_heads * S * d_key * isz
    kv_resident = kv_resident_bytes <= int(0.5 * cap)
    kv_bytes = kv_resident_bytes if kv_resident else 2 * 2 * S * d_key * isz

    def _step2_bytes(tq):
        return (kv_bytes
                + 2 * tq * d_key * isz                           # Q tile
                + 2 * tq * S * mask_isz                          # mask tile
                + 2 * (num_heads * d_key * E + E) * w_isz        # Wo + bo
                + 2 * tq * E * isz                               # out block
                + (2 * tq * S * probs_isz if return_probs else 0)
                + tq * E * 4                                     # acc scratch
                + 3 * tq * S * 4)                                # f32 score temps

    while _step2_bytes(q_tile) > budget:
        smaller = [t for t in (512, 256, 128, 64, 32, 16, 8)
                   if t < q_tile and S % t == 0]
        if not smaller:
            break
        q_tile = smaller[0]

    # v7x megacore balance: prefer an even number of parallel grid steps.
    if (B * (S // q_tile)) % 2 == 1 and q_tile >= 256 and S % (q_tile // 2) == 0:
        q_tile //= 2

    # ---- call 1: fused-width Q/K/V projection ----------------------------------
    qkv_shape = jax.ShapeDtypeStruct((B, num_heads, S, d_key), act_dtype)
    step1 = (3 * 2 * s_tile * E * isz
             + 2 * 3 * (E * d_model + d_model) * w_isz
             + 3 * 2 * s_tile * d_model * isz
             + 3 * s_tile * d_model * 4)
    flops1 = 6 * B * S * E * d_model
    bytes1 = (3 * B * S * E + 3 * B * S * d_model) * isz \
        + 3 * (E * d_model + d_model) * w_isz

    embed_spec = pl.BlockSpec((1, s_tile, E), lambda b, s: (b, s, 0))
    w_spec = pl.BlockSpec((E, d_model), lambda b, s: (0, 0))       # resident
    b_spec = pl.BlockSpec((1, d_model), lambda b, s: (0, 0))       # resident
    qkv_out_spec = pl.BlockSpec((1, num_heads, s_tile, d_key),
                                lambda b, s: (b, 0, s, 0))

    q_h, k_h, v_h = pl.pallas_call(
        functools.partial(_qkv_proj_kernel, num_heads, d_key),
        grid_spec=pltpu.PrefetchScalarGridSpec(
            num_scalar_prefetch=0,
            grid=(B, S // s_tile),
            in_specs=[embed_spec, embed_spec, embed_spec,
                      w_spec, b_spec, w_spec, b_spec, w_spec, b_spec],
            out_specs=[qkv_out_spec, qkv_out_spec, qkv_out_spec],
        ),
        out_shape=(qkv_shape, qkv_shape, qkv_shape),
        compiler_params=pltpu.CompilerParams(
            dimension_semantics=("parallel", "parallel"),
            vmem_limit_bytes=_vmem_limit(step1, budget)),
        cost_estimate=pl.CostEstimate(flops=int(flops1), transcendentals=0,
                                      bytes_accessed=int(bytes1)),
    )(query_embed, key_embed, value_embed, wq_s, bq_s, wk, bk, wv, bv)

    # ---- call 2: attention + output projection ---------------------------------
    if kv_resident:
        kv_spec = pl.BlockSpec((1, num_heads, S, d_key),
                               lambda b, i, h: (b, 0, 0, 0))       # batch-only
    else:
        kv_spec = pl.BlockSpec((1, 1, S, d_key),
                               lambda b, i, h: (b, h, 0, 0))       # fallback

    in_specs = [
        pl.BlockSpec((1, 1, q_tile, d_key), lambda b, i, h: (b, h, i, 0)),  # Q
        kv_spec,                                                            # K
        kv_spec,                                                            # V
    ]
    inputs = [q_h, k_h, v_h]
    if has_mask:
        in_specs.append(pl.BlockSpec((1, q_tile, S), lambda b, i, h: (b, i, 0)))
        inputs.append(mask_arr)
    in_specs += [
        pl.BlockSpec((num_heads, d_key, E), lambda b, i, h: (0, 0, 0)),     # Wo
        pl.BlockSpec((1, E), lambda b, i, h: (0, 0)),                       # bo
    ]
    inputs += [wo_h, bo_r]

    out_specs = [pl.BlockSpec((1, q_tile, E), lambda b, i, h: (b, i, 0))]
    out_shapes = [jax.ShapeDtypeStruct((B, S, E), act_dtype)]
    if return_probs:
        out_specs.append(pl.BlockSpec((1, 1, q_tile, S),
                                      lambda b, i, h: (b, h, i, 0)))
        out_shapes.append(jax.ShapeDtypeStruct((B, num_heads, S, S), probs_dtype))

    flops2 = 4 * B * num_heads * S * S * d_key + 2 * B * S * d_model * E
    trans2 = B * num_heads * S * S
    bytes2 = (3 * B * S * d_model + B * S * E) * isz \
        + B * S * S * mask_isz \
        + (B * num_heads * S * S * probs_isz if return_probs else 0) \
        + (d_model * E + E) * w_isz

    results = pl.pallas_call(
        functools.partial(_attn_kernel, num_heads, has_mask, return_probs,
                          kv_resident),
        grid_spec=pltpu.PrefetchScalarGridSpec(
            num_scalar_prefetch=0,
            grid=(B, S // q_tile, num_heads),
            in_specs=in_specs,
            out_specs=out_specs,
            scratch_shapes=[pltpu.VMEM((q_tile, E), jnp.float32)],
        ),
        out_shape=tuple(out_shapes),
        compiler_params=pltpu.CompilerParams(
            dimension_semantics=("parallel", "parallel", "arbitrary"),
            vmem_limit_bytes=_vmem_limit(_step2_bytes(q_tile), budget)),
        cost_estimate=pl.CostEstimate(flops=int(flops2),
                                      transcendentals=int(trans2),
                                      bytes_accessed=int(bytes2)),
    )(*inputs)

    if return_probs:
        out, probs = results
        return out, probs
    out = results[0] if isinstance(results, (tuple, list)) else results
    return out, None


# --------------------------------------------------------------------------- #
# Pure-JAX reference (replicates the PyTorch forward, eval mode)               #
# --------------------------------------------------------------------------- #
def _reference(query_embed, key_embed, value_embed, mask, params, num_heads):
    B, S, E = query_embed.shape
    d_model = params['wq'].shape[1]
    d_key = d_model // num_heads

    q = query_embed @ params['wq'] + params['bq']
    k = key_embed @ params['wk'] + params['bk']
    v = value_embed @ params['wv'] + params['bv']
    q = q.reshape(B, S, num_heads, d_key).transpose(0, 2, 1, 3)
    k = k.reshape(B, S, num_heads, d_key).transpose(0, 2, 1, 3)
    v = v.reshape(B, S, num_heads, d_key).transpose(0, 2, 1, 3)
    scores = jnp.einsum('bhqd,bhkd->bhqk', q, k) / jnp.sqrt(jnp.float32(d_key))
    if mask is not None:
        scores = jnp.where(mask[:, None, :, :] == 0, -1e10, scores)
    probs = jax.nn.softmax(scores, axis=-1)
    ctx = jnp.einsum('bhqk,bhkd->bhqd', probs, v)
    ctx = ctx.transpose(0, 2, 1, 3).reshape(B, S, d_model)
    out = ctx @ params['wo'] + params['bo']
    return out, probs


if __name__ == "__main__":
    # small shapes consistent with the module
    batch, seq_len = 2, 8
    d_embed, d_model, num_heads = 32, 32, 4

    key = jax.random.PRNGKey(0)
    keys = jax.random.split(key, 12)

    def init_w(k, shape, fan_in):
        bound = 1.0 / jnp.sqrt(jnp.float32(fan_in))
        return jax.random.uniform(k, shape, jnp.float32, -bound, bound)

    params = {
        'wq': init_w(keys[0], (d_embed, d_model), d_embed),
        'bq': init_w(keys[1], (d_model,), d_embed),
        'wk': init_w(keys[2], (d_embed, d_model), d_embed),
        'bk': init_w(keys[3], (d_model,), d_embed),
        'wv': init_w(keys[4], (d_embed, d_model), d_embed),
        'bv': init_w(keys[5], (d_model,), d_embed),
        'wo': init_w(keys[6], (d_model, d_embed), d_model),
        'bo': init_w(keys[7], (d_embed,), d_model),
    }

    q_embed = jax.random.normal(keys[8], (batch, seq_len, d_embed), jnp.float32)
    k_embed = jax.random.normal(keys[9], (batch, seq_len, d_embed), jnp.float32)
    v_embed = jax.random.normal(keys[10], (batch, seq_len, d_embed), jnp.float32)
    # causal-style mask (0 => masked out), deterministic
    mask = jnp.tril(jnp.ones((seq_len, seq_len), jnp.float32))
    mask = jnp.broadcast_to(mask, (batch, seq_len, seq_len))

    out, probs = multi_head_attention(q_embed, k_embed, v_embed, mask,
                                      params, num_heads)
    jax.block_until_ready((out, probs))

    ref_out, ref_probs = _reference(q_embed, k_embed, v_embed, mask,
                                    params, num_heads)
    assert jnp.allclose(out, ref_out, atol=1e-4, rtol=1e-4), \
        float(jnp.max(jnp.abs(out - ref_out)))
    assert jnp.allclose(probs, ref_probs, atol=1e-4, rtol=1e-4), \
        float(jnp.max(jnp.abs(probs - ref_probs)))

    # also exercise the mask-free code path
    out_nm, probs_nm = multi_head_attention(q_embed, k_embed, v_embed, None,
                                            params, num_heads)
    ref_out_nm, ref_probs_nm = _reference(q_embed, k_embed, v_embed, None,
                                          params, num_heads)
    jax.block_until_ready((out_nm, probs_nm))
    assert jnp.allclose(out_nm, ref_out_nm, atol=1e-4, rtol=1e-4)
    assert jnp.allclose(probs_nm, ref_probs_nm, atol=1e-4, rtol=1e-4)

    print("KERNEL_OK")
</pallas_src>

<mosaic_0001>
module attributes {stable_mosaic.version = 11 : i64} {
  func.func @_qkv_proj_kernel(%arg0: i32, %arg1: i32, %arg2: memref<1x8x32xf32, #tpu.memory_space<vmem>>, %arg3: memref<1x8x32xf32, #tpu.memory_space<vmem>>, %arg4: memref<1x8x32xf32, #tpu.memory_space<vmem>>, %arg5: memref<32x32xf32, #tpu.memory_space<vmem>>, %arg6: memref<1x32xf32, #tpu.memory_space<vmem>>, %arg7: memref<32x32xf32, #tpu.memory_space<vmem>>, %arg8: memref<1x32xf32, #tpu.memory_space<vmem>>, %arg9: memref<32x32xf32, #tpu.memory_space<vmem>>, %arg10: memref<1x32xf32, #tpu.memory_space<vmem>>, %arg11: memref<1x4x8x8xf32, #tpu.memory_space<vmem>>, %arg12: memref<1x4x8x8xf32, #tpu.memory_space<vmem>>, %arg13: memref<1x4x8x8xf32, #tpu.memory_space<vmem>>) attributes {dimension_semantics = [#tpu.dimension_semantics<parallel>, #tpu.dimension_semantics<parallel>], iteration_bounds = array<i64: 2, 1>, scalar_prefetch = 0 : i64, scratch_operands = 0 : i64, tpu.core_type = #tpu.core_type<tc>, window_params = [{transform_indices = @transform_0, window_bounds = array<i64: 1, 8, 32>}, {transform_indices = @transform_1, window_bounds = array<i64: 1, 8, 32>}, {transform_indices = @transform_2, window_bounds = array<i64: 1, 8, 32>}, {pipeline_mode = #tpu.pipeline_mode<synchronous>, transform_indices = @transform_3, window_bounds = array<i64: 32, 32>}, {pipeline_mode = #tpu.pipeline_mode<synchronous>, transform_indices = @transform_4, window_bounds = array<i64: 1, 32>}, {pipeline_mode = #tpu.pipeline_mode<synchronous>, transform_indices = @transform_5, window_bounds = array<i64: 32, 32>}, {pipeline_mode = #tpu.pipeline_mode<synchronous>, transform_indices = @transform_6, window_bounds = array<i64: 1, 32>}, {pipeline_mode = #tpu.pipeline_mode<synchronous>, transform_indices = @transform_7, window_bounds = array<i64: 32, 32>}, {pipeline_mode = #tpu.pipeline_mode<synchronous>, transform_indices = @transform_8, window_bounds = array<i64: 1, 32>}, {transform_indices = @transform_9, window_bounds = array<i64: 1, 4, 8, 8>}, {transform_indices = @transform_10, window_bounds = array<i64: 1, 4, 8, 8>}, {transform_indices = @transform_11, window_bounds = array<i64: 1, 4, 8, 8>}]} {
    %c0 = arith.constant 0 : index
    %c0_0 = arith.constant 0 : index
    %c0_1 = arith.constant 0 : index
    %0 = vector.load %arg2[%c0, %c0_0, %c0_1] : memref<1x8x32xf32, #tpu.memory_space<vmem>>, vector<1x8x32xf32>
    %1 = vector.shape_cast %0 : vector<1x8x32xf32> to vector<8x32xf32>
    %c0_2 = arith.constant 0 : index
    %c0_3 = arith.constant 0 : index
    %c0_4 = arith.constant 0 : index
    %2 = vector.load %arg3[%c0_2, %c0_3, %c0_4] : memref<1x8x32xf32, #tpu.memory_space<vmem>>, vector<1x8x32xf32>
    %3 = vector.shape_cast %2 : vector<1x8x32xf32> to vector<8x32xf32>
    %c0_5 = arith.constant 0 : index
    %c0_6 = arith.constant 0 : index
    %c0_7 = arith.constant 0 : index
    %4 = vector.load %arg4[%c0_5, %c0_6, %c0_7] : memref<1x8x32xf32, #tpu.memory_space<vmem>>, vector<1x8x32xf32>
    %5 = vector.shape_cast %4 : vector<1x8x32xf32> to vector<8x32xf32>
    %c0_8 = arith.constant 0 : index
    %c0_9 = arith.constant 0 : index
    %6 = vector.load %arg5[%c0_8, %c0_9] : memref<32x32xf32, #tpu.memory_space<vmem>>, vector<32x32xf32>
    %cst = arith.constant dense<0.000000e+00> : vector<8x32xf32>
    %7 = tpu.matmul %1, %6, %cst {dimension_numbers = #tpu.dot_dimension_numbers<[1], [0], [0], [1], [0, 0, 1, 1], [], []>} : vector<8x32xf32>, vector<32x32xf32>, vector<8x32xf32> -> vector<8x32xf32>
    %c0_10 = arith.constant 0 : index
    %c0_11 = arith.constant 0 : index
    %8 = vector.load %arg6[%c0_10, %c0_11] : memref<1x32xf32, #tpu.memory_space<vmem>>, vector<1x32xf32>
    %9 = vector.broadcast %8 : vector<1x32xf32> to vector<8x32xf32>
    %10 = arith.addf %7, %9 : vector<8x32xf32>
    %c0_12 = arith.constant 0 : index
    %c0_13 = arith.constant 0 : index
    %11 = vector.load %arg7[%c0_12, %c0_13] : memref<32x32xf32, #tpu.memory_space<vmem>>, vector<32x32xf32>
    %cst_14 = arith.constant dense<0.000000e+00> : vector<8x32xf32>
    %12 = tpu.matmul %3, %11, %cst_14 {dimension_numbers = #tpu.dot_dimension_numbers<[1], [0], [0], [1], [0, 0, 1, 1], [], []>} : vector<8x32xf32>, vector<32x32xf32>, vector<8x32xf32> -> vector<8x32xf32>
    %c0_15 = arith.constant 0 : index
    %c0_16 = arith.constant 0 : index
    %13 = vector.load %arg8[%c0_15, %c0_16] : memref<1x32xf32, #tpu.memory_space<vmem>>, vector<1x32xf32>
    %14 = vector.broadcast %13 : vector<1x32xf32> to vector<8x32xf32>
    %15 = arith.addf %12, %14 : vector<8x32xf32>
    %c0_17 = arith.constant 0 : index
    %c0_18 = arith.constant 0 : index
    %16 = vector.load %arg9[%c0_17, %c0_18] : memref<32x32xf32, #tpu.memory_space<vmem>>, vector<32x32xf32>
    %cst_19 = arith.constant dense<0.000000e+00> : vector<8x32xf32>
    %17 = tpu.matmul %5, %16, %cst_19 {dimension_numbers = #tpu.dot_dimension_numbers<[1], [0], [0], [1], [0, 0, 1, 1], [], []>} : vector<8x32xf32>, vector<32x32xf32>, vector<8x32xf32> -> vector<8x32xf32>
    %c0_20 = arith.constant 0 : index
    %c0_21 = arith.constant 0 : index
    %18 = vector.load %arg10[%c0_20, %c0_21] : memref<1x32xf32, #tpu.memory_space<vmem>>, vector<1x32xf32>
    %19 = vector.broadcast %18 : vector<1x32xf32> to vector<8x32xf32>
    %20 = arith.addf %17, %19 : vector<8x32xf32>
    %21 = vector.extract_strided_slice %10 {offsets = [0, 0], sizes = [8, 8], strides = [1, 1]} : vector<8x32xf32> to vector<8x8xf32>
    %c0_22 = arith.constant 0 : index
    %c0_23 = arith.constant 0 : index
    %c0_24 = arith.constant 0 : index
    %c0_25 = arith.constant 0 : index
    %22 = vector.load %arg11[%c0_22, %c0_23, %c0_24, %c0_25] : memref<1x4x8x8xf32, #tpu.memory_space<vmem>>, vector<1x1x8x8xf32>
    %23 = vector.shape_cast %22 : vector<1x1x8x8xf32> to vector<8x8xf32>
    %24 = vector.shape_cast %21 : vector<8x8xf32> to vector<1x1x8x8xf32>
    tpu.vector_store %arg11[%c0_22, %c0_23, %c0_24, %c0_25], %24 {strides = array<i32>} : memref<1x4x8x8xf32, #tpu.memory_space<vmem>>, vector<1x1x8x8xf32>,
    %25 = vector.extract_strided_slice %15 {offsets = [0, 0], sizes = [8, 8], strides = [1, 1]} : vector<8x32xf32> to vector<8x8xf32>
    %c0_26 = arith.constant 0 : index
    %c0_27 = arith.constant 0 : index
    %c0_28 = arith.constant 0 : index
    %c0_29 = arith.constant 0 : index
    %26 = vector.load %arg12[%c0_26, %c0_27, %c0_28, %c0_29] : memref<1x4x8x8xf32, #tpu.memory_space<vmem>>, vector<1x1x8x8xf32>
    %27 = vector.shape_cast %26 : vector<1x1x8x8xf32> to vector<8x8xf32>
    %28 = vector.shape_cast %25 : vector<8x8xf32> to vector<1x1x8x8xf32>
    tpu.vector_store %arg12[%c0_26, %c0_27, %c0_28, %c0_29], %28 {strides = array<i32>} : memref<1x4x8x8xf32, #tpu.memory_space<vmem>>, vector<1x1x8x8xf32>,
    %29 = vector.extract_strided_slice %20 {offsets = [0, 0], sizes = [8, 8], strides = [1, 1]} : vector<8x32xf32> to vector<8x8xf32>
    %c0_30 = arith.constant 0 : index
    %c0_31 = arith.constant 0 : index
    %c0_32 = arith.constant 0 : index
    %c0_33 = arith.constant 0 : index
    %30 = vector.load %arg13[%c0_30, %c0_31, %c0_32, %c0_33] : memref<1x4x8x8xf32, #tpu.memory_space<vmem>>, vector<1x1x8x8xf32>
    %31 = vector.shape_cast %30 : vector<1x1x8x8xf32> to vector<8x8xf32>
    %32 = vector.shape_cast %29 : vector<8x8xf32> to vector<1x1x8x8xf32>
    tpu.vector_store %arg13[%c0_30, %c0_31, %c0_32, %c0_33], %32 {strides = array<i32>} : memref<1x4x8x8xf32, #tpu.memory_space<vmem>>, vector<1x1x8x8xf32>,
    %33 = vector.extract_strided_slice %10 {offsets = [0, 8], sizes = [8, 8], strides = [1, 1]} : vector<8x32xf32> to vector<8x8xf32>
    %c0_34 = arith.constant 0 : index
    %c1 = arith.constant 1 : index
    %c0_35 = arith.constant 0 : index
    %c0_36 = arith.constant 0 : index
    %34 = vector.load %arg11[%c0_34, %c1, %c0_35, %c0_36] : memref<1x4x8x8xf32, #tpu.memory_space<vmem>>, vector<1x1x8x8xf32>
    %35 = vector.shape_cast %34 : vector<1x1x8x8xf32> to vector<8x8xf32>
    %36 = vector.shape_cast %33 : vector<8x8xf32> to vector<1x1x8x8xf32>
    tpu.vector_store %arg11[%c0_34, %c1, %c0_35, %c0_36], %36 {strides = array<i32>} : memref<1x4x8x8xf32, #tpu.memory_space<vmem>>, vector<1x1x8x8xf32>,
    %37 = vector.extract_strided_slice %15 {offsets = [0, 8], sizes = [8, 8], strides = [1, 1]} : vector<8x32xf32> to vector<8x8xf32>
    %c0_37 = arith.constant 0 : index
    %c1_38 = arith.constant 1 : index
    %c0_39 = arith.constant 0 : index
    %c0_40 = arith.constant 0 : index
    %38 = vector.load %arg12[%c0_37, %c1_38, %c0_39, %c0_40] : memref<1x4x8x8xf32, #tpu.memory_space<vmem>>, vector<1x1x8x8xf32>
    %39 = vector.shape_cast %38 : vector<1x1x8x8xf32> to vector<8x8xf32>
    %40 = vector.shape_cast %37 : vector<8x8xf32> to vector<1x1x8x8xf32>
    tpu.vector_store %arg12[%c0_37, %c1_38, %c0_39, %c0_40], %40 {strides = array<i32>} : memref<1x4x8x8xf32, #tpu.memory_space<vmem>>, vector<1x1x8x8xf32>,
    %41 = vector.extract_strided_slice %20 {offsets = [0, 8], sizes = [8, 8], strides = [1, 1]} : vector<8x32xf32> to vector<8x8xf32>
    %c0_41 = arith.constant 0 : index
    %c1_42 = arith.constant 1 : index
    %c0_43 = arith.constant 0 : index
    %c0_44 = arith.constant 0 : index
    %42 = vector.load %arg13[%c0_41, %c1_42, %c0_43, %c0_44] : memref<1x4x8x8xf32, #tpu.memory_space<vmem>>, vector<1x1x8x8xf32>
    %43 = vector.shape_cast %42 : vector<1x1x8x8xf32> to vector<8x8xf32>
    %44 = vector.shape_cast %41 : vector<8x8xf32> to vector<1x1x8x8xf32>
    tpu.vector_store %arg13[%c0_41, %c1_42, %c0_43, %c0_44], %44 {strides = array<i32>} : memref<1x4x8x8xf32, #tpu.memory_space<vmem>>, vector<1x1x8x8xf32>,
    %45 = vector.extract_strided_slice %10 {offsets = [0, 16], sizes = [8, 8], strides = [1, 1]} : vector<8x32xf32> to vector<8x8xf32>
    %c0_45 = arith.constant 0 : index
    %c2 = arith.constant 2 : index
    %c0_46 = arith.constant 0 : index
    %c0_47 = arith.constant 0 : index
    %46 = vector.load %arg11[%c0_45, %c2, %c0_46, %c0_47] : memref<1x4x8x8xf32, #tpu.memory_space<vmem>>, vector<1x1x8x8xf32>
    %47 = vector.shape_cast %46 : vector<1x1x8x8xf32> to vector<8x8xf32>
    %48 = vector.shape_cast %45 : vector<8x8xf32> to vector<1x1x8x8xf32>
    tpu.vector_store %arg11[%c0_45, %c2, %c0_46, %c0_47], %48 {strides = array<i32>} : memref<1x4x8x8xf32, #tpu.memory_space<vmem>>, vector<1x1x8x8xf32>,
    %49 = vector.extract_strided_slice %15 {offsets = [0, 16], sizes = [8, 8], strides = [1, 1]} : vector<8x32xf32> to vector<8x8xf32>
    %c0_48 = arith.constant 0 : index
    %c2_49 = arith.constant 2 : index
    %c0_50 = arith.constant 0 : index
    %c0_51 = arith.constant 0 : index
    %50 = vector.load %arg12[%c0_48, %c2_49, %c0_50, %c0_51] : memref<1x4x8x8xf32, #tpu.memory_space<vmem>>, vector<1x1x8x8xf32>
    %51 = vector.shape_cast %50 : vector<1x1x8x8xf32> to vector<8x8xf32>
    %52 = vector.shape_cast %49 : vector<8x8xf32> to vector<1x1x8x8xf32>
    tpu.vector_store %arg12[%c0_48, %c2_49, %c0_50, %c0_51], %52 {strides = array<i32>} : memref<1x4x8x8xf32, #tpu.memory_space<vmem>>, vector<1x1x8x8xf32>,
    %53 = vector.extract_strided_slice %20 {offsets = [0, 16], sizes = [8, 8], strides = [1, 1]} : vector<8x32xf32> to vector<8x8xf32>
    %c0_52 = arith.constant 0 : index
    %c2_53 = arith.constant 2 : index
    %c0_54 = arith.constant 0 : index
    %c0_55 = arith.constant 0 : index
    %54 = vector.load %arg13[%c0_52, %c2_53, %c0_54, %c0_55] : memref<1x4x8x8xf32, #tpu.memory_space<vmem>>, vector<1x1x8x8xf32>
    %55 = vector.shape_cast %54 : vector<1x1x8x8xf32> to vector<8x8xf32>
    %56 = vector.shape_cast %53 : vector<8x8xf32> to vector<1x1x8x8xf32>
    tpu.vector_store %arg13[%c0_52, %c2_53, %c0_54, %c0_55], %56 {strides = array<i32>} : memref<1x4x8x8xf32, #tpu.memory_space<vmem>>, vector<1x1x8x8xf32>,
    %57 = vector.extract_strided_slice %10 {offsets = [0, 24], sizes = [8, 8], strides = [1, 1]} : vector<8x32xf32> to vector<8x8xf32>
    %c0_56 = arith.constant 0 : index
    %c3 = arith.constant 3 : index
    %c0_57 = arith.constant 0 : index
    %c0_58 = arith.constant 0 : index
    %58 = vector.load %arg11[%c0_56, %c3, %c0_57, %c0_58] : memref<1x4x8x8xf32, #tpu.memory_space<vmem>>, vector<1x1x8x8xf32>
    %59 = vector.shape_cast %58 : vector<1x1x8x8xf32> to vector<8x8xf32>
    %60 = vector.shape_cast %57 : vector<8x8xf32> to vector<1x1x8x8xf32>
    tpu.vector_store %arg11[%c0_56, %c3, %c0_57, %c0_58], %60 {strides = array<i32>} : memref<1x4x8x8xf32, #tpu.memory_space<vmem>>, vector<1x1x8x8xf32>,
    %61 = vector.extract_strided_slice %15 {offsets = [0, 24], sizes = [8, 8], strides = [1, 1]} : vector<8x32xf32> to vector<8x8xf32>
    %c0_59 = arith.constant 0 : index
    %c3_60 = arith.constant 3 : index
    %c0_61 = arith.constant 0 : index
    %c0_62 = arith.constant 0 : index
    %62 = vector.load %arg12[%c0_59, %c3_60, %c0_61, %c0_62] : memref<1x4x8x8xf32, #tpu.memory_space<vmem>>, vector<1x1x8x8xf32>
    %63 = vector.shape_cast %62 : vector<1x1x8x8xf32> to vector<8x8xf32>
    %64 = vector.shape_cast %61 : vector<8x8xf32> to vector<1x1x8x8xf32>
    tpu.vector_store %arg12[%c0_59, %c3_60, %c0_61, %c0_62], %64 {strides = array<i32>} : memref<1x4x8x8xf32, #tpu.memory_space<vmem>>, vector<1x1x8x8xf32>,
    %65 = vector.extract_strided_slice %20 {offsets = [0, 24], sizes = [8, 8], strides = [1, 1]} : vector<8x32xf32> to vector<8x8xf32>
    %c0_63 = arith.constant 0 : index
    %c3_64 = arith.constant 3 : index
    %c0_65 = arith.constant 0 : index
    %c0_66 = arith.constant 0 : index
    %66 = vector.load %arg13[%c0_63, %c3_64, %c0_65, %c0_66] : memref<1x4x8x8xf32, #tpu.memory_space<vmem>>, vector<1x1x8x8xf32>
    %67 = vector.shape_cast %66 : vector<1x1x8x8xf32> to vector<8x8xf32>
    %68 = vector.shape_cast %65 : vector<8x8xf32> to vector<1x1x8x8xf32>
    tpu.vector_store %arg13[%c0_63, %c3_64, %c0_65, %c0_66], %68 {strides = array<i32>} : memref<1x4x8x8xf32, #tpu.memory_space<vmem>>, vector<1x1x8x8xf32>,
    return
  }
  func.func @transform_0(%arg0: i32, %arg1: i32) -> (i32, i32, i32) {
    %c0_i32 = arith.constant 0 : i32
    %c0_i32_0 = arith.constant 0 : i32
    return %arg0, %arg1, %c0_i32 : i32, i32, i32
  }
  func.func @transform_1(%arg0: i32, %arg1: i32) -> (i32, i32, i32) {
    %c0_i32 = arith.constant 0 : i32
    %c0_i32_0 = arith.constant 0 : i32
    return %arg0, %arg1, %c0_i32 : i32, i32, i32
  }
  func.func @transform_2(%arg0: i32, %arg1: i32) -> (i32, i32, i32) {
    %c0_i32 = arith.constant 0 : i32
    %c0_i32_0 = arith.constant 0 : i32
    return %arg0, %arg1, %c0_i32 : i32, i32, i32
  }
  func.func @transform_3(%arg0: i32, %arg1: i32) -> (i32, i32) {
    %c0_i32 = arith.constant 0 : i32
    %c0_i32_0 = arith.constant 0 : i32
    %c0_i32_1 = arith.constant 0 : i32
    return %c0_i32, %c0_i32_0 : i32, i32
  }
  func.func @transform_4(%arg0: i32, %arg1: i32) -> (i32, i32) {
    %c0_i32 = arith.constant 0 : i32
    %c0_i32_0 = arith.constant 0 : i32
    %c0_i32_1 = arith.constant 0 : i32
    return %c0_i32, %c0_i32_0 : i32, i32
  }
  func.func @transform_5(%arg0: i32, %arg1: i32) -> (i32, i32) {
    %c0_i32 = arith.constant 0 : i32
    %c0_i32_0 = arith.constant 0 : i32
    %c0_i32_1 = arith.constant 0 : i32
    return %c0_i32, %c0_i32_0 : i32, i32
  }
  func.func @transform_6(%arg0: i32, %arg1: i32) -> (i32, i32) {
    %c0_i32 = arith.constant 0 : i32
    %c0_i32_0 = arith.constant 0 : i32
    %c0_i32_1 = arith.constant 0 : i32
    return %c0_i32, %c0_i32_0 : i32, i32
  }
  func.func @transform_7(%arg0: i32, %arg1: i32) -> (i32, i32) {
    %c0_i32 = arith.constant 0 : i32
    %c0_i32_0 = arith.constant 0 : i32
    %c0_i32_1 = arith.constant 0 : i32
    return %c0_i32, %c0_i32_0 : i32, i32
  }
  func.func @transform_8(%arg0: i32, %arg1: i32) -> (i32, i32) {
    %c0_i32 = arith.constant 0 : i32
    %c0_i32_0 = arith.constant 0 : i32
    %c0_i32_1 = arith.constant 0 : i32
    return %c0_i32, %c0_i32_0 : i32, i32
  }
  func.func @transform_9(%arg0: i32, %arg1: i32) -> (i32, i32, i32, i32) {
    %c0_i32 = arith.constant 0 : i32
    %c0_i32_0 = arith.constant 0 : i32
    %c0_i32_1 = arith.constant 0 : i32
    return %arg0, %c0_i32, %arg1, %c0_i32_0 : i32, i32, i32, i32
  }
  func.func @transform_10(%arg0: i32, %arg1: i32) -> (i32, i32, i32, i32) {
    %c0_i32 = arith.constant 0 : i32
    %c0_i32_0 = arith.constant 0 : i32
    %c0_i32_1 = arith.constant 0 : i32
    return %arg0, %c0_i32, %arg1, %c0_i32_0 : i32, i32, i32, i32
  }
  func.func @transform_11(%arg0: i32, %arg1: i32) -> (i32, i32, i32, i32) {
    %c0_i32 = arith.constant 0 : i32
    %c0_i32_0 = arith.constant 0 : i32
    %c0_i32_1 = arith.constant 0 : i32
    return %arg0, %c0_i32, %arg1, %c0_i32_0 : i32, i32, i32, i32
  }
}

</mosaic_0001>

<llo_original>
// kernel: tpu_custom_call.1
$region0: #{tpu_custom_call.1}
  #allocation0 [shape = 'u32[]', space=smem, size = 0x4, offset = 0x4, fixed_abs, tag = 'smem constant byte address 0x4 - core index']
  #allocation1 [shape = 'u32[72,128]{1,0:T(1,128)}', space=vmem, size = 0x9000, scoped, tag = 'internal scratch']
  %s0 = inlined_call_operand.hbm [shape: f32[2,8,32], index: 0, kind: input, shape index: {}]
  %s1 = inlined_call_operand.hbm [shape: f32[2,8,32], index: 1, kind: input, shape index: {}]
  %s2 = inlined_call_operand.hbm [shape: f32[2,8,32], index: 2, kind: input, shape index: {}]
  %s3 = inlined_call_operand.hbm [shape: f32[32,32], index: 3, kind: input, shape index: {}]
  %s4 = inlined_call_operand.vmem [shape: f32[1,32], index: 4, kind: input, shape index: {}]
  %s5 = inlined_call_operand.hbm [shape: f32[32,32], index: 5, kind: input, shape index: {}]
  %s6 = inlined_call_operand.vmem [shape: f32[1,32], index: 6, kind: input, shape index: {}]
  %s7 = inlined_call_operand.hbm [shape: f32[32,32], index: 7, kind: input, shape index: {}]
  %s8 = inlined_call_operand.vmem [shape: f32[1,32], index: 8, kind: input, shape index: {}]
  %s9 = inlined_call_operand.hbm [shape: f32[2,4,8,8], index: 9, kind: output, shape index: {0}]
  %s10 = inlined_call_operand.hbm [shape: f32[2,4,8,8], index: 10, kind: output, shape index: {1}]
  %s11 = inlined_call_operand.hbm [shape: f32[2,4,8,8], index: 11, kind: output, shape index: {2}]
  %12 = xla_tuple %s9, %s10, %s11
  %s13 = sld [smem:[#allocation0]]
  $region109: #{tpu_custom_call.1} parent=0
    _
  %s15 = ssub.s32 1, %s13
  %s16 = scalar_select 0, %s15, %s13
  $region1: #{tpu_custom_call.1} parent=0
    #allocation2 [shape = 'u8[8192]{0}', space=vmem, size = 0x2000, scoped, tag = 'input window, operand 0']
    #allocation3 [shape = 's32[2]{0}', space=sflag, size = 0x8, scoped, tag = 'scoped memory for tpu_custom_call.1']
    #allocation4 [shape = 's32[2]{0}', space=sflag, size = 0x8, scoped, tag = 'scoped memory for tpu_custom_call.1']
    #allocation5 [shape = 'u8[8192]{0}', space=vmem, size = 0x2000, scoped, tag = 'input window, operand 1']
    #allocation6 [shape = 's32[2]{0}', space=sflag, size = 0x8, scoped, tag = 'scoped memory for tpu_custom_call.1']
    #allocation7 [shape = 'u8[8192]{0}', space=vmem, size = 0x2000, scoped, tag = 'input window, operand 2']
    #allocation8 [shape = 'u8[16384]{0}', space=vmem, size = 0x4000, scoped, tag = 'input window, operand 3, single buffered']
    #allocation9 [shape = 's32[1]{0}', space=sflag, size = 0x4, scoped, tag = 'scoped memory for tpu_custom_call.1']
    #allocation10 [shape = 'u8[16384]{0}', space=vmem, size = 0x4000, scoped, tag = 'input window, operand 5, single buffered']
    #allocation11 [shape = 'u8[16384]{0}', space=vmem, size = 0x4000, scoped, tag = 'input window, operand 7, single buffered']
    #allocation12 [shape = 's32[1]{0}', space=sflag, size = 0x4, scoped, tag = 'scoped memory for tpu_custom_call.1']
    #allocation13 [shape = 'u8[32768]{0}', space=vmem, size = 0x8000, scoped, tag = 'output window, operand 0']
    #allocation14 [shape = 'u8[32768]{0}', space=vmem, size = 0x8000, scoped, tag = 'output window, operand 1']
    #allocation15 [shape = 's32[2]{0}', space=sflag, size = 0x8, scoped, tag = 'scoped memory for tpu_custom_call.1']
    #allocation16 [shape = 'u8[32768]{0}', space=vmem, size = 0x8000, scoped, tag = 'output window, operand 2']
    %17 = vsyncpa [#allocation3], 0
    %s18 = scalar_lea.sflag [#allocation3], 1
    %19 = vsyncpa %s18, 0
    %20 = vsyncpa [#allocation6], 0
    %s21 = scalar_lea.sflag [#allocation6], 1
    %22 = vsyncpa %s21, 0
    %23 = vsyncpa [#allocation9], 0
    %24 = vsyncpa [#allocation12], 0
    %25 = vsyncpa [#allocation4], 0
    %s26 = scalar_lea.sflag [#allocation4], 1
    %27 = vsyncpa %s26, 0
    %28 = vsyncpa [#allocation15], 0
    %s29 = scalar_lea.sflag [#allocation15], 1
    %30 = vsyncpa %s29, 0
    loop: start=0, step=1, limit=4
    $region2: #{tpu_custom_call.1} parent=1 // loop_pre_header
      _
    $region3: #{tpu_custom_call.1} parent=1 // loop_header
      %s32 = sphi 0, %s36
      %p33 = scmp.ge.s32.totalorder %s32, 4
      %s39 = sphi 0, %s51
      %s40 = sphi 0, %s47
      %s41 = sphi 0, %s39
      %s42 = sphi 0, %s40
      %s43 = sphi 0, %s41
      %s44 = sphi 0, %s42
      %s56 = sphi 0, %s58
      %s59 = sphi 0, %s56
      %s60 = sphi 0, %s59
      %s76 = sphi 0, %s60
      %s84 = sphi 0, %s86
      %s87 = sphi 0, %s84
      %s88 = sphi 0, %s87
      %s104 = sphi 0, %s88
      %s112 = sphi 0, %s114
      %s115 = sphi 0, %s112
      %s116 = sphi 0, %s115
      %s132 = sphi 0, %s116
      %s136 = sphi 0, %s136
      %s138 = sphi 0, %s136
      %s139 = sphi 0, %s138
      %s153 = sphi 0, %s139
      %s157 = sphi 0, %s157
      %s159 = sphi 0, %s157
      %s160 = sphi 0, %s159
      %s174 = sphi 0, %s160
      %s178 = sphi 0, %s178
      %s180 = sphi 0, %s178
      %s181 = sphi 0, %s180
      %s195 = sphi 0, %s181
      %s199 = sphi 0, %s199
      %s201 = sphi 0, %s199
      %s202 = sphi 0, %s201
      %s216 = sphi 0, %s202
      %s220 = sphi 0, %s220
      %s222 = sphi 0, %s220
      %s223 = sphi 0, %s222
      %s237 = sphi 0, %s223
      %s241 = sphi 0, %s241
      %s243 = sphi 0, %s241
      %s244 = sphi 0, %s243
      %s258 = sphi 0, %s244
      %s266 = sphi 0, %s268
      %s269 = sphi 0, %s266
      %s270 = sphi 0, %s269
      %s286 = sphi 0, %s270
      %s294 = sphi 0, %s296
      %s297 = sphi 0, %s294
      %s298 = sphi 0, %s297
      %s314 = sphi 0, %s298
      %s322 = sphi 0, %s324
      %s325 = sphi 0, %s322
      %s326 = sphi 0, %s325
      %s342 = sphi 0, %s326
    $region4: #{tpu_custom_call.1} parent=1 // loop_header_branch
      %35 = sbr.rel (%p33) target = $region8
    $region5: #{tpu_custom_call.1} parent=1 // loop_body
      %s37 = ssub.s32 %s32, 1
      %s38 = ssub.s32 %s32, 2
      %s45 = sadd.s32 1, %s40
      %p46 = scmp.ge.s32.totalorder %s45, 1
      %s47 = scalar_select %p46, 0, %s45
      %s48 = sadd.s32 1, %s39
      %s49 = scalar_select %p46, %s48, %s39
      %p50 = scmp.ge.s32.totalorder %s49, 2
      %s51 = scalar_select %p50, 0, %s49
      %s52 = ssub.s32 %s39, %s51
      %s53 = ssub.s32 %s40, %s47
      %s54 = sor.u32 %s52, %s53
      %p55 = scmp.eq.s32.totalorder %s54, 0
      %s57 = sadd.s32 %s56, 1
      %s58 = scalar_select %p55, %s56, %s57
      %p61 = pneg %p55
      %p62 = scmp.eq.s32.totalorder %s32, 1
      %p63 = por %p61, %p62
      %p64 = scmp.ne.s32.totalorder %s56, %s59
      %p65 = scmp.eq.s32.totalorder %s32, 0
      %p66 = por %p64, %p65
      %p67 = scmp.ne.s32.totalorder %s56, %s59
      %p68 = scmp.eq.s32.totalorder %s37, 1
      %p69 = por %p67, %p68
      %p70 = scmp.ne.s32.totalorder %s59, %s60
      %p71 = scmp.eq.s32.totalorder %s37, 0
      %p72 = por %p70, %p71
      %p73 = scmp.ne.s32.totalorder %s59, %s60
      %p74 = scmp.eq.s32.totalorder %s38, 1
      %p75 = por %p73, %p74
      %p77 = scmp.ne.s32.totalorder %s60, %s76
      %p78 = scmp.eq.s32.totalorder %s38, 0
      %p79 = por %p77, %p78
      %s80 = ssub.s32 %s39, %s51
      %s81 = ssub.s32 %s40, %s47
      %s82 = sor.u32 %s80, %s81
      %p83 = scmp.eq.s32.totalorder %s82, 0
      %s85 = sadd.s32 %s84, 1
      %s86 = scalar_select %p83, %s84, %s85
      %p89 = pneg %p83
      %p90 = scmp.eq.s32.totalorder %s32, 1
      %p91 = por %p89, %p90
      %p92 = scmp.ne.s32.totalorder %s84, %s87
      %p93 = scmp.eq.s32.totalorder %s32, 0
      %p94 = por %p92, %p93
      %p95 = scmp.ne.s32.totalorder %s84, %s87
      %p96 = scmp.eq.s32.totalorder %s37, 1
      %p97 = por %p95, %p96
      %p98 = scmp.ne.s32.totalorder %s87, %s88
      %p99 = scmp.eq.s32.totalorder %s37, 0
      %p100 = por %p98, %p99
      %p101 = scmp.ne.s32.totalorder %s87, %s88
      %p102 = scmp.eq.s32.totalorder %s38, 1
      %p103 = por %p101, %p102
      %p105 = scmp.ne.s32.totalorder %s88, %s104
      %p106 = scmp.eq.s32.totalorder %s38, 0
      %p107 = por %p105, %p106
      %s108 = ssub.s32 %s39, %s51
      %s109 = ssub.s32 %s40, %s47
      %s110 = sor.u32 %s108, %s109
      %p111 = scmp.eq.s32.totalorder %s110, 0
      %s113 = sadd.s32 %s112, 1
      %s114 = scalar_select %p111, %s112, %s113
      %p117 = pneg %p111
      %p118 = scmp.eq.s32.totalorder %s32, 1
      %p119 = por %p117, %p118
      %p120 = scmp.ne.s32.totalorder %s112, %s115
      %p121 = scmp.eq.s32.totalorder %s32, 0
      %p122 = por %p120, %p121
      %p123 = scmp.ne.s32.totalorder %s112, %s115
      %p124 = scmp.eq.s32.totalorder %s37, 1
      %p125 = por %p123, %p124
      %p126 = scmp.ne.s32.totalorder %s115, %s116
      %p127 = scmp.eq.s32.totalorder %s37, 0
      %p128 = por %p126, %p127
      %p129 = scmp.ne.s32.totalorder %s115, %s116
      %p130 = scmp.eq.s32.totalorder %s38, 1
      %p131 = por %p129, %p130
      %p133 = scmp.ne.s32.totalorder %s116, %s132
      %p134 = scmp.eq.s32.totalorder %s38, 0
      %p135 = por %p133, %p134
      %s137 = sadd.s32 %s136, 1
      %p140 = scmp.eq.s32.totalorder %s32, 1
      %p141 = scmp.ne.s32.totalorder %s136, %s138
      %p142 = scmp.eq.s32.totalorder %s32, 0
      %p143 = por %p141, %p142
      %p144 = scmp.ne.s32.totalorder %s136, %s138
      %p145 = scmp.eq.s32.totalorder %s37, 1
      %p146 = por %p144, %p145
      %p147 = scmp.ne.s32.totalorder %s138, %s139
      %p148 = scmp.eq.s32.totalorder %s37, 0
      %p149 = por %p147, %p148
      %p150 = scmp.ne.s32.totalorder %s138, %s139
      %p151 = scmp.eq.s32.totalorder %s38, 1
      %p152 = por %p150, %p151
      %p154 = scmp.ne.s32.totalorder %s139, %s153
      %p155 = scmp.eq.s32.totalorder %s38, 0
      %p156 = por %p154, %p155
      %s158 = sadd.s32 %s157, 1
      %p161 = scmp.eq.s32.totalorder %s32, 1
      %p162 = scmp.ne.s32.totalorder %s157, %s159
      %p163 = scmp.eq.s32.totalorder %s32, 0
      %p164 = por %p162, %p163
      %p165 = scmp.ne.s32.totalorder %s157, %s159
      %p166 = scmp.eq.s32.totalorder %s37, 1
      %p167 = por %p165, %p166
      %p168 = scmp.ne.s32.totalorder %s159, %s160
      %p169 = scmp.eq.s32.totalorder %s37, 0
      %p170 = por %p168, %p169
      %p171 = scmp.ne.s32.totalorder %s159, %s160
      %p172 = scmp.eq.s32.totalorder %s38, 1
      %p173 = por %p171, %p172
      %p175 = scmp.ne.s32.totalorder %s160, %s174
      %p176 = scmp.eq.s32.totalorder %s38, 0
      %p177 = por %p175, %p176
      %s179 = sadd.s32 %s178, 1
      %p182 = scmp.eq.s32.totalorder %s32, 1
      %p183 = scmp.ne.s32.totalorder %s178, %s180
      %p184 = scmp.eq.s32.totalorder %s32, 0
      %p185 = por %p183, %p184
      %p186 = scmp.ne.s32.totalorder %s178, %s180
      %p187 = scmp.eq.s32.totalorder %s37, 1
      %p188 = por %p186, %p187
      %p189 = scmp.ne.s32.totalorder %s180, %s181
      %p190 = scmp.eq.s32.totalorder %s37, 0
      %p191 = por %p189, %p190
      %p192 = scmp.ne.s32.totalorder %s180, %s181
      %p193 = scmp.eq.s32.totalorder %s38, 1
      %p194 = por %p192, %p193
      %p196 = scmp.ne.s32.totalorder %s181, %s195
      %p197 = scmp.eq.s32.totalorder %s38, 0
      %p198 = por %p196, %p197
      %s200 = sadd.s32 %s199, 1
      %p203 = scmp.eq.s32.totalorder %s32, 1
      %p204 = scmp.ne.s32.totalorder %s199, %s201
      %p205 = scmp.eq.s32.totalorder %s32, 0
      %p206 = por %p204, %p205
      %p207 = scmp.ne.s32.totalorder %s199, %s201
      %p208 = scmp.eq.s32.totalorder %s37, 1
      %p209 = por %p207, %p208
      %p210 = scmp.ne.s32.totalorder %s201, %s202
      %p211 = scmp.eq.s32.totalorder %s37, 0
      %p212 = por %p210, %p211
      %p213 = scmp.ne.s32.totalorder %s201, %s202
      %p214 = scmp.eq.s32.totalorder %s38, 1
      %p215 = por %p213, %p214
      %p217 = scmp.ne.s32.totalorder %s202, %s216
      %p218 = scmp.eq.s32.totalorder %s38, 0
      %p219 = por %p217, %p218
      %s221 = sadd.s32 %s220, 1
      %p224 = scmp.eq.s32.totalorder %s32, 1
      %p225 = scmp.ne.s32.totalorder %s220, %s222
      %p226 = scmp.eq.s32.totalorder %s32, 0
      %p227 = por %p225, %p226
      %p228 = scmp.ne.s32.totalorder %s220, %s222
      %p229 = scmp.eq.s32.totalorder %s37, 1
      %p230 = por %p228, %p229
      %p231 = scmp.ne.s32.totalorder %s222, %s223
      %p232 = scmp.eq.s32.totalorder %s37, 0
      %p233 = por %p231, %p232
      %p234 = scmp.ne.s32.totalorder %s222, %s223
      %p235 = scmp.eq.s32.totalorder %s38, 1
      %p236 = por %p234, %p235
      %p238 = scmp.ne.s32.totalorder %s223, %s237
      %p239 = scmp.eq.s32.totalorder %s38, 0
      %p240 = por %p238, %p239
      %s242 = sadd.s32 %s241, 1
      %p245 = scmp.eq.s32.totalorder %s32, 1
      %p246 = scmp.ne.s32.totalorder %s241, %s243
      %p247 = scmp.eq.s32.totalorder %s32, 0
      %p248 = por %p246, %p247
      %p249 = scmp.ne.s32.totalorder %s241, %s243
      %p250 = scmp.eq.s32.totalorder %s37, 1
      %p251 = por %p249, %p250
      %p252 = scmp.ne.s32.totalorder %s243, %s244
      %p253 = scmp.eq.s32.totalorder %s37, 0
      %p254 = por %p252, %p253
      %p255 = scmp.ne.s32.totalorder %s243, %s244
      %p256 = scmp.eq.s32.totalorder %s38, 1
      %p257 = por %p255, %p256
      %p259 = scmp.ne.s32.totalorder %s244, %s258
      %p260 = scmp.eq.s32.totalorder %s38, 0
      %p261 = por %p259, %p260
      %s262 = ssub.s32 %s39, %s51
      %s263 = ssub.s32 %s40, %s47
      %s264 = sor.u32 %s262, %s263
      %p265 = scmp.eq.s32.totalorder %s264, 0
      %s267 = sadd.s32 %s266, 1
      %s268 = scalar_select %p265, %s266, %s267
      %p271 = pneg %p265
      %p272 = scmp.eq.s32.totalorder %s32, 1
      %p273 = por %p271, %p272
      %p274 = scmp.ne.s32.totalorder %s266, %s269
      %p275 = scmp.eq.s32.totalorder %s32, 0
      %p276 = por %p274, %p275
      %p277 = scmp.ne.s32.totalorder %s266, %s269
      %p278 = scmp.eq.s32.totalorder %s37, 1
      %p279 = por %p277, %p278
      %p280 = scmp.ne.s32.totalorder %s269, %s270
      %p281 = scmp.eq.s32.totalorder %s37, 0
      %p282 = por %p280, %p281
      %p283 = scmp.ne.s32.totalorder %s269, %s270
      %p284 = scmp.eq.s32.totalorder %s38, 1
      %p285 = por %p283, %p284
      %p287 = scmp.ne.s32.totalorder %s270, %s286
      %p288 = scmp.eq.s32.totalorder %s38, 0
      %p289 = por %p287, %p288
      %s290 = ssub.s32 %s39, %s51
      %s291 = ssub.s32 %s40, %s47
      %s292 = sor.u32 %s290, %s291
      %p293 = scmp.eq.s32.totalorder %s292, 0
      %s295 = sadd.s32 %s294, 1
      %s296 = scalar_select %p293, %s294, %s295
      %p299 = pneg %p293
      %p300 = scmp.eq.s32.totalorder %s32, 1
      %p301 = por %p299, %p300
      %p302 = scmp.ne.s32.totalorder %s294, %s297
      %p303 = scmp.eq.s32.totalorder %s32, 0
      %p304 = por %p302, %p303
      %p305 = scmp.ne.s32.totalorder %s294, %s297
      %p306 = scmp.eq.s32.totalorder %s37, 1
      %p307 = por %p305, %p306
      %p308 = scmp.ne.s32.totalorder %s297, %s298
      %p309 = scmp.eq.s32.totalorder %s37, 0
      %p310 = por %p308, %p309
      %p311 = scmp.ne.s32.totalorder %s297, %s298
      %p312 = scmp.eq.s32.totalorder %s38, 1
      %p313 = por %p311, %p312
      %p315 = scmp.ne.s32.totalorder %s298, %s314
      %p316 = scmp.eq.s32.totalorder %s38, 0
      %p317 = por %p315, %p316
      %s318 = ssub.s32 %s39, %s51
      %s319 = ssub.s32 %s40, %s47
      %s320 = sor.u32 %s318, %s319
      %p321 = scmp.eq.s32.totalorder %s320, 0
      %s323 = sadd.s32 %s322, 1
      %s324 = scalar_select %p321, %s322, %s323
      %p327 = pneg %p321
      %p328 = scmp.eq.s32.totalorder %s32, 1
      %p329 = por %p327, %p328
      %p330 = scmp.ne.s32.totalorder %s322, %s325
      %p331 = scmp.eq.s32.totalorder %s32, 0
      %p332 = por %p330, %p331
      %p333 = scmp.ne.s32.totalorder %s322, %s325
      %p334 = scmp.eq.s32.totalorder %s37, 1
      %p335 = por %p333, %p334
      %p336 = scmp.ne.s32.totalorder %s325, %s326
      %p337 = scmp.eq.s32.totalorder %s37, 0
      %p338 = por %p336, %p337
      %p339 = scmp.ne.s32.totalorder %s325, %s326
      %p340 = scmp.eq.s32.totalorder %s38, 1
      %p341 = por %p339, %p340
      %p343 = scmp.ne.s32.totalorder %s326, %s342
      %p344 = scmp.eq.s32.totalorder %s38, 0
      %p345 = por %p343, %p344
      %p346 = scmp.le.s32.totalorder 1, %s32
      %p347 = scmp.lt.s32.totalorder %s32, 3
      %p348 = pnand %p346, %p347
      %p349 = pneg %p348
      // Predicated region
      $region9: #{tpu_custom_call.1} parent=5 // pred_check
        _
      $region10: #{tpu_custom_call.1} parent=5 // pred_check_branch
        %351 = sbr.rel (%p348) target = $region12
      $region11: #{tpu_custom_call.1} parent=5 // pred_region
        %s352 = ssub.s32 %s32, 1
        // Predicated region
        $region13: #{tpu_custom_call.1} parent=11 // pred_check
          %p353 = pneg %p149
        $region14: #{tpu_custom_call.1} parent=11 // pred_check_branch
          %355 = sbr.rel (%p353) target = $region16
        $region15: #{tpu_custom_call.1} parent=11 // pred_region
          %357 = vsyncadd [#allocation9], 0
          %s358 = sshll.u32 %s3, 4
          %s359 = int_to_ptr.hbm [resolvable:$true] %s358
          %s360 = sshll.u32 [#allocation8], 4
          %s361 = int_to_ptr.vmem [resolvable:$true] %s360
          %366 = dma.hbm_to_vmem [thread:$0]  %s359, 512, %s361, [#allocation9], 128, 128, 8
        $region16: #{tpu_custom_call.1} parent=11 // pred_fallthru
          _
        // Predicated region
        $region17: #{tpu_custom_call.1} parent=11 // pred_check
          %p367 = pneg %p170
        $region18: #{tpu_custom_call.1} parent=11 // pred_check_branch
          %369 = sbr.rel (%p367) target = $region20
        $region19: #{tpu_custom_call.1} parent=11 // pred_region
          _
        $region20: #{tpu_custom_call.1} parent=11 // pred_fallthru
          _
        // Predicated region
        $region21: #{tpu_custom_call.1} parent=11 // pred_check
          %p370 = pneg %p191
        $region22: #{tpu_custom_call.1} parent=11 // pred_check_branch
          %372 = sbr.rel (%p370) target = $region24
        $region23: #{tpu_custom_call.1} parent=11 // pred_region
          %374 = vsyncadd [#allocation9], 0
          %s375 = sshll.u32 %s5, 4
          %s376 = int_to_ptr.hbm [resolvable:$true] %s375
          %s377 = sshll.u32 [#allocation10], 4
          %s378 = int_to_ptr.vmem [resolvable:$true] %s377
          %383 = dma.hbm_to_vmem [thread:$0]  %s376, 512, %s378, [#allocation9], 128, 128, 8
        $region24: #{tpu_custom_call.1} parent=11 // pred_fallthru
          _
        // Predicated region
        $region25: #{tpu_custom_call.1} parent=11 // pred_check
          %p384 = pneg %p212
        $region26: #{tpu_custom_call.1} parent=11 // pred_check_branch
          %386 = sbr.rel (%p384) target = $region28
        $region27: #{tpu_custom_call.1} parent=11 // pred_region
          _
        $region28: #{tpu_custom_call.1} parent=11 // pred_fallthru
          _
        // Predicated region
        $region29: #{tpu_custom_call.1} parent=11 // pred_check
          %p387 = pneg %p233
        $region30: #{tpu_custom_call.1} parent=11 // pred_check_branch
          %389 = sbr.rel (%p387) target = $region32
        $region31: #{tpu_custom_call.1} parent=11 // pred_region
          %391 = vsyncadd [#allocation12], 0
          %s392 = sshll.u32 %s7, 4
          %s393 = int_to_ptr.hbm [resolvable:$true] %s392
          %s394 = sshll.u32 [#allocation11], 4
          %s395 = int_to_ptr.vmem [resolvable:$true] %s394
          %400 = dma.hbm_to_vmem [thread:$0]  %s393, 512, %s395, [#allocation12], 128, 128, 8
        $region32: #{tpu_custom_call.1} parent=11 // pred_fallthru
          _
        // Predicated region
        $region33: #{tpu_custom_call.1} parent=11 // pred_check
          %p401 = pneg %p254
        $region34: #{tpu_custom_call.1} parent=11 // pred_check_branch
          %403 = sbr.rel (%p401) target = $region36
        $region35: #{tpu_custom_call.1} parent=11 // pred_region
          _
        $region36: #{tpu_custom_call.1} parent=11 // pred_fallthru
          _
      $region12: #{tpu_custom_call.1} parent=5 // pred_fallthru
        _
      %p404 = scmp.lt.s32.totalorder %s32, 2
      // Predicated region
      $region37: #{tpu_custom_call.1} parent=5 // pred_check
        %p405 = pneg %p404
      $region38: #{tpu_custom_call.1} parent=5 // pred_check_branch
        %407 = sbr.rel (%p405) target = $region40
      $region39: #{tpu_custom_call.1} parent=5 // pred_region
        // Predicated region
        $region41: #{tpu_custom_call.1} parent=39 // pred_check
          %p408 = pneg %p66
        $region42: #{tpu_custom_call.1} parent=39 // pred_check_branch
          %410 = sbr.rel (%p408) target = $region44
        $region43: #{tpu_custom_call.1} parent=39 // pred_region
          %s411 = sand.u32 %s56, 1
          %s412 = scalar_lea.sflag [#allocation3], %s411
          %s413 = sand.u32 %s56, 1
          %s414 = smul.addr %s413, 8
          %s415 = scalar_lea.vmem [#allocation2], %s414
          %417 = vsyncadd %s412, 0
          %s418 = sadd.s32 %s40, %s39
          %s419 = smul.addr %s418, 8
          %s420 = scalar_lea.hbm %s0, %s419
          %s422 = sshll.u32 %s420, 4
          %s423 = int_to_ptr.hbm [resolvable:$true] %s422
          %s424 = sshll.u32 %s415, 4
          %s425 = int_to_ptr.vmem [resolvable:$true] %s424
          %427 = dma.hbm_to_vmem [thread:$0]  %s423, 128, %s425, %s412
        $region44: #{tpu_custom_call.1} parent=39 // pred_fallthru
          _
        // Predicated region
        $region45: #{tpu_custom_call.1} parent=39 // pred_check
          %p428 = pneg %p94
        $region46: #{tpu_custom_call.1} parent=39 // pred_check_branch
          %430 = sbr.rel (%p428) target = $region48
        $region47: #{tpu_custom_call.1} parent=39 // pred_region
          %s431 = sand.u32 %s32, 1
          %s432 = scalar_lea.sflag [#allocation6], %s431
          %s433 = sand.u32 %s84, 1
          %s434 = smul.addr %s433, 8
          %s435 = scalar_lea.vmem [#allocation5], %s434
          %437 = vsyncadd %s432, 0
          %s438 = sadd.s32 %s40, %s39
          %s439 = smul.addr %s438, 8
          %s440 = scalar_lea.hbm %s1, %s439
          %s442 = sshll.u32 %s440, 4
          %s443 = int_to_ptr.hbm [resolvable:$true] %s442
          %s444 = sshll.u32 %s435, 4
          %s445 = int_to_ptr.vmem [resolvable:$true] %s444
          %447 = dma.hbm_to_vmem [thread:$0]  %s443, 128, %s445, %s432
        $region48: #{tpu_custom_call.1} parent=39 // pred_fallthru
          _
        // Predicated region
        $region49: #{tpu_custom_call.1} parent=39 // pred_check
          %p448 = pneg %p122
        $region50: #{tpu_custom_call.1} parent=39 // pred_check_branch
          %450 = sbr.rel (%p448) target = $region52
        $region51: #{tpu_custom_call.1} parent=39 // pred_region
          %s451 = sand.u32 %s32, 1
          %s452 = scalar_lea.sflag [#allocation6], %s451
          %s453 = sand.u32 %s112, 1
          %s454 = smul.addr %s453, 8
          %s455 = scalar_lea.vmem [#allocation7], %s454
          %457 = vsyncadd %s452, 0
          %s458 = sadd.s32 %s40, %s39
          %s459 = smul.addr %s458, 8
          %s460 = scalar_lea.hbm %s2, %s459
          %s462 = sshll.u32 %s460, 4
          %s463 = int_to_ptr.hbm [resolvable:$true] %s462
          %s464 = sshll.u32 %s455, 4
          %s465 = int_to_ptr.vmem [resolvable:$true] %s464
          %467 = dma.hbm_to_vmem [thread:$0]  %s463, 128, %s465, %s452
        $region52: #{tpu_custom_call.1} parent=39 // pred_fallthru
          _
      $region40: #{tpu_custom_call.1} parent=5 // pred_fallthru
        _
      %p468 = scmp.le.s32.totalorder 1, %s32
      %p469 = scmp.lt.s32.totalorder %s32, 3
      %p470 = pnand %p468, %p469
      %p471 = pneg %p470
      // Predicated region
      $region53: #{tpu_custom_call.1} parent=5 // pred_check
        _
      $region54: #{tpu_custom_call.1} parent=5 // pred_check_branch
        %473 = sbr.rel (%p470) target = $region56
      $region55: #{tpu_custom_call.1} parent=5 // pred_region
        %s474 = ssub.s32 %s32, 1
        %s475 = sand.u32 %s59, 1
        %s476 = scalar_lea.sflag [#allocation3], %s475
        %s477 = sand.u32 %s59, 1
        %s478 = smul.addr %s477, 8
        %s479 = scalar_lea.vmem [#allocation2], %s478
        // Predicated region
        $region57: #{tpu_custom_call.1} parent=55 // pred_check
          %p480 = pneg %p72
        $region58: #{tpu_custom_call.1} parent=55 // pred_check_branch
          %482 = sbr.rel (%p480) target = $region60
        $region59: #{tpu_custom_call.1} parent=55 // pred_region
          %484 = dma.done %s476, 128
        $region60: #{tpu_custom_call.1} parent=55 // pred_fallthru
          _
        %s485 = sand.u32 %s37, 1
        %s486 = scalar_lea.sflag [#allocation6], %s485
        %s487 = sand.u32 %s87, 1
        %s488 = smul.addr %s487, 8
        %s489 = scalar_lea.vmem [#allocation5], %s488
        // Predicated region
        $region61: #{tpu_custom_call.1} parent=55 // pred_check
          %p490 = pneg %p100
        $region62: #{tpu_custom_call.1} parent=55 // pred_check_branch
          %492 = sbr.rel (%p490) target = $region64
        $region63: #{tpu_custom_call.1} parent=55 // pred_region
          %494 = dma.done %s486, 128
        $region64: #{tpu_custom_call.1} parent=55 // pred_fallthru
          _
        %s495 = sand.u32 %s37, 1
        %s496 = scalar_lea.sflag [#allocation6], %s495
        %s497 = sand.u32 %s115, 1
        %s498 = smul.addr %s497, 8
        %s499 = scalar_lea.vmem [#allocation7], %s498
        // Predicated region
        $region65: #{tpu_custom_call.1} parent=55 // pred_check
          %p500 = pneg %p128
        $region66: #{tpu_custom_call.1} parent=55 // pred_check_branch
          %502 = sbr.rel (%p500) target = $region68
        $region67: #{tpu_custom_call.1} parent=55 // pred_region
          %504 = dma.done %s496, 128
        $region68: #{tpu_custom_call.1} parent=55 // pred_fallthru
          _
        // Predicated region
        $region69: #{tpu_custom_call.1} parent=55 // pred_check
          %p505 = pneg %p149
        $region70: #{tpu_custom_call.1} parent=55 // pred_check_branch
          %507 = sbr.rel (%p505) target = $region72
        $region71: #{tpu_custom_call.1} parent=55 // pred_region
          %509 = dma.done [#allocation9], 512
        $region72: #{tpu_custom_call.1} parent=55 // pred_fallthru
          _
        // Predicated region
        $region73: #{tpu_custom_call.1} parent=55 // pred_check
          %p510 = pneg %p191
        $region74: #{tpu_custom_call.1} parent=55 // pred_check_branch
          %512 = sbr.rel (%p510) target = $region76
        $region75: #{tpu_custom_call.1} parent=55 // pred_region
          %514 = dma.done [#allocation9], 512
        $region76: #{tpu_custom_call.1} parent=55 // pred_fallthru
          _
        // Predicated region
        $region77: #{tpu_custom_call.1} parent=55 // pred_check
          %p515 = pneg %p233
        $region78: #{tpu_custom_call.1} parent=55 // pred_check_branch
          %517 = sbr.rel (%p515) target = $region80
        $region79: #{tpu_custom_call.1} parent=55 // pred_region
          %519 = dma.done [#allocation12], 512
        $region80: #{tpu_custom_call.1} parent=55 // pred_fallthru
          _
        %s520 = sand.u32 %s59, 1
        %s521 = scalar_lea.sflag [#allocation3], %s520
        %s522 = sand.u32 %s59, 1
        %s523 = smul.addr %s522, 8
        %s524 = scalar_lea.vmem [#allocation2], %s523
        %p525 = pneg %p72
        %p526 = pneg %p69
        %s527 = sand.u32 %s37, 1
        %s528 = scalar_lea.sflag [#allocation6], %s527
        %s529 = sand.u32 %s87, 1
        %s530 = smul.addr %s529, 8
        %s531 = scalar_lea.vmem [#allocation5], %s530
        %p532 = pneg %p100
        %p533 = pneg %p97
        %s534 = sand.u32 %s37, 1
        %s535 = scalar_lea.sflag [#allocation6], %s534
        %s536 = sand.u32 %s115, 1
        %s537 = smul.addr %s536, 8
        %s538 = scalar_lea.vmem [#allocation7], %s537
        %p539 = pneg %p128
        %p540 = pneg %p125
        %p541 = pneg %p149
        %p542 = pneg %p146
        %p543 = pneg %p170
        %p544 = pneg %p167
        %p545 = pneg %p191
        %p546 = pneg %p188
        %p547 = pneg %p212
        %p548 = pneg %p209
        %p549 = pneg %p233
        %p550 = pneg %p230
        %p551 = pneg %p254
        %p552 = pneg %p251
        %p553 = pneg %p282
        %p554 = pneg %p279
        %s555 = sand.u32 %s269, 1
        %s556 = scalar_lea.sflag [#allocation4], %s555
        %s557 = sand.u32 %s269, 1
        %s558 = smul.addr %s557, 32
        %s559 = scalar_lea.vmem [#allocation13], %s558
        %p560 = pneg %p310
        %p561 = pneg %p307
        %s562 = sand.u32 %s37, 1
        %s563 = scalar_lea.sflag [#allocation15], %s562
        %s564 = sand.u32 %s297, 1
        %s565 = smul.addr %s564, 32
        %s566 = scalar_lea.vmem [#allocation14], %s565
        %p567 = pneg %p338
        %p568 = pneg %p335
        %s569 = sand.u32 %s37, 1
        %s570 = scalar_lea.sflag [#allocation15], %s569
        %s571 = sand.u32 %s325, 1
        %s572 = smul.addr %s571, 32
        %s573 = scalar_lea.vmem [#allocation16], %s572
        %v574 = vld [vmem:[%s479] sm:$0xff]
        %v575 = vld [vmem:[%s489] sm:$0xff]
        %v576 = vld [vmem:[%s499] sm:$0xff]
        %v577 = vld [vmem:[#allocation8] sm:$0xff]
        %v578 = vld [vmem:[#allocation8 + $0x8] sm:$0xff]
        %v579 = vld [vmem:[#allocation8 + $0x10] sm:$0xff]
        %v580 = vld [vmem:[#allocation8 + $0x18] sm:$0xff]
        %v581 = vld [vmem:[%s4] sm:$0x1]
        %v583 = vperm.slane %v581, 0
        %vm585 = vcmask 261120
        %v587 = vsel %vm585, %v574, 0
        %589 = vmatpush.msra.mxu0 0.0
        %590 = vmatpush.msra.mxu0 0.0
        %591 = vmatpush.msra.mxu0 0.0
        %592 = vmatpush.msra.mxu0 0.0
        %593 = vmatpush.msra.mxu0 0.0
        %594 = vmatpush.msra.mxu0 0.0
        %595 = vmatpush.msra.mxu0 0.0
        %596 = vmatpush.msra.mxu0 0.0
        %597 = vmatpush.msra.mxu0 0.0
        %598 = vmatpush.msra.mxu0 0.0
        %599 = vmatpush.msra.mxu0 0.0
        %600 = vmatpush.msra.mxu0 0.0
        %601 = vmatpush.msra.mxu0 %v580
        %602 = vmatpush.msra.mxu0 %v579
        %603 = vmatpush.msra.mxu0 %v578
        %604 = vmatpush.msra.mxu0 %v577
        %605 = vmatmul.f32.gmra.mxu0 %v587
        %v606 = vpop.f32.mrf.mxu0
        %v607 = vadd.f32 %v583, %v606
        %608 = vdwg.mxu0
        %v609 = vld [vmem:[#allocation10] sm:$0xff]
        %v610 = vld [vmem:[#allocation10 + $0x8] sm:$0xff]
        %v611 = vld [vmem:[#allocation10 + $0x10] sm:$0xff]
        %v612 = vld [vmem:[#allocation10 + $0x18] sm:$0xff]
        %v613 = vld [vmem:[%s6] sm:$0x1]
        %v615 = vperm.slane %v613, 0
        %v618 = vsel %vm585, %v575, 0
        %620 = vmatpush.msra.mxu0 0.0
        %621 = vmatpush.msra.mxu0 0.0
        %622 = vmatpush.msra.mxu0 0.0
        %623 = vmatpush.msra.mxu0 0.0
        %624 = vmatpush.msra.mxu0 0.0
        %625 = vmatpush.msra.mxu0 0.0
        %626 = vmatpush.msra.mxu0 0.0
        %627 = vmatpush.msra.mxu0 0.0
        %628 = vmatpush.msra.mxu0 0.0
        %629 = vmatpush.msra.mxu0 0.0
        %630 = vmatpush.msra.mxu0 0.0
        %631 = vmatpush.msra.mxu0 0.0
        %632 = vmatpush.msra.mxu0 %v612
        %633 = vmatpush.msra.mxu0 %v611
        %634 = vmatpush.msra.mxu0 %v610
        %635 = vmatpush.msra.mxu0 %v609
        %636 = vmatmul.f32.gmra.mxu0 %v618
        %v637 = vpop.f32.mrf.mxu0
        %v638 = vadd.f32 %v615, %v637
        %639 = vdwg.mxu0
        %v640 = vld [vmem:[#allocation11] sm:$0xff]
        %v641 = vld [vmem:[#allocation11 + $0x8] sm:$0xff]
        %v642 = vld [vmem:[#allocation11 + $0x10] sm:$0xff]
        %v643 = vld [vmem:[#allocation11 + $0x18] sm:$0xff]
        %v644 = vld [vmem:[%s8] sm:$0x1]
        %v646 = vperm.slane %v644, 0
        %v649 = vsel %vm585, %v576, 0
        %651 = vmatpush.msra.mxu0 0.0
        %652 = vmatpush.msra.mxu0 0.0
        %653 = vmatpush.msra.mxu0 0.0
        %654 = vmatpush.msra.mxu0 0.0
        %655 = vmatpush.msra.mxu0 0.0
        %656 = vmatpush.msra.mxu0 0.0
        %657 = vmatpush.msra.mxu0 0.0
        %658 = vmatpush.msra.mxu0 0.0
        %659 = vmatpush.msra.mxu0 0.0
        %660 = vmatpush.msra.mxu0 0.0
        %661 = vmatpush.msra.mxu0 0.0
        %662 = vmatpush.msra.mxu0 0.0
        %663 = vmatpush.msra.mxu0 %v643
        %664 = vmatpush.msra.mxu0 %v642
        %665 = vmatpush.msra.mxu0 %v641
        %666 = vmatpush.msra.mxu0 %v640
        %667 = vmatmul.f32.gmra.mxu0 %v649
        %v668 = vpop.f32.mrf.mxu0
        %v669 = vadd.f32 %v646, %v668
        %670 = vdwg.mxu0
        %vm671 = vcmask 64512
        %672 = vst.msk [vmem:[%s559] sm:$0xff] %vm671, %v607
        %673 = vst.msk [vmem:[%s566] sm:$0xff] %vm671, %v638
        %674 = vst.msk [vmem:[%s573] sm:$0xff] %vm671, %v669
        %676 = vrot.lane.b32.xlu0 %v607, 120
        %v677 = vpop.permute.xlu0 %676
        %s679 = scalar_lea.vmem %s559, 8 [#allocation13]
        %680 = vst.msk [vmem:[%s679] sm:$0xff] %vm671, %v677
        %682 = vrot.lane.b32.xlu0 %v638, 120
        %v683 = vpop.permute.xlu0 %682
        %s685 = scalar_lea.vmem %s566, 8 [#allocation14]
        %686 = vst.msk [vmem:[%s685] sm:$0xff] %vm671, %v683
        %688 = vrot.lane.b32.xlu0 %v669, 120
        %v689 = vpop.permute.xlu0 %688
        %s691 = scalar_lea.vmem %s573, 8 [#allocation16]
        %692 = vst.msk [vmem:[%s691] sm:$0xff] %vm671, %v689
        %693 = vrot.lane.b32.xlu0 %v607, 112
        %v694 = vpop.permute.xlu0 %693
        %s696 = scalar_lea.vmem %s559, 16 [#allocation13]
        %697 = vst.msk [vmem:[%s696] sm:$0xff] %vm671, %v694
        %698 = vrot.lane.b32.xlu0 %v638, 112
        %v699 = vpop.permute.xlu0 %698
        %s701 = scalar_lea.vmem %s566, 16 [#allocation14]
        %702 = vst.msk [vmem:[%s701] sm:$0xff] %vm671, %v699
        %703 = vrot.lane.b32.xlu0 %v669, 112
        %v704 = vpop.permute.xlu0 %703
        %s706 = scalar_lea.vmem %s573, 16 [#allocation16]
        %707 = vst.msk [vmem:[%s706] sm:$0xff] %vm671, %v704
        %708 = vrot.lane.b32.xlu0 %v607, 104
        %v709 = vpop.permute.xlu0 %708
        %s711 = scalar_lea.vmem %s559, 24 [#allocation13]
        %712 = vst.msk [vmem:[%s711] sm:$0xff] %vm671, %v709
        %713 = vrot.lane.b32.xlu0 %v638, 104
        %v714 = vpop.permute.xlu0 %713
        %s716 = scalar_lea.vmem %s566, 24 [#allocation14]
        %717 = vst.msk [vmem:[%s716] sm:$0xff] %vm671, %v714
        %718 = vrot.lane.b32.xlu0 %v669, 104
        %v719 = vpop.permute.xlu0 %718
        %s721 = scalar_lea.vmem %s573, 24 [#allocation16]
        %722 = vst.msk [vmem:[%s721] sm:$0xff] %vm671, %v719
        %s723 = sand.u32 %s269, 1
        %s724 = scalar_lea.sflag [#allocation4], %s723
        %s725 = sand.u32 %s269, 1
        %s726 = smul.addr %s725, 32
        %s727 = scalar_lea.vmem [#allocation13], %s726
        %s728 = sand.u32 %s37, 1
        %s729 = scalar_lea.sflag [#allocation15], %s728
        %s730 = sand.u32 %s297, 1
        %s731 = smul.addr %s730, 32
        %s732 = scalar_lea.vmem [#allocation14], %s731
        %s733 = sand.u32 %s37, 1
        %s734 = scalar_lea.sflag [#allocation15], %s733
        %s735 = sand.u32 %s325, 1
        %s736 = smul.addr %s735, 32
        %s737 = scalar_lea.vmem [#allocation16], %s736
        // Predicated region
        $region81: #{tpu_custom_call.1} parent=55 // pred_check
          %p738 = pneg %p279
        $region82: #{tpu_custom_call.1} parent=55 // pred_check_branch
          %740 = sbr.rel (%p738) target = $region84
        $region83: #{tpu_custom_call.1} parent=55 // pred_region
          %742 = vsyncadd %s724, 0
          %s743 = smul.addr %s41, 4
          %s744 = sadd.s32 %s42, %s743
          %s745 = smul.addr %s744, 8
          %s746 = scalar_lea.hbm %s9, %s745
          %s747 = sshll.u32 %s727, 4
          %s748 = int_to_ptr.vmem [resolvable:$true] %s747
          %s749 = sshll.u32 %s746, 4
          %s750 = int_to_ptr.hbm [resolvable:$true] %s749
          %755 = dma.vmem_to_hbm [thread:$0]  %s748, 512, %s750, %s724, 128, 128, 8
        $region84: #{tpu_custom_call.1} parent=55 // pred_fallthru
          _
        // Predicated region
        $region85: #{tpu_custom_call.1} parent=55 // pred_check
          %p756 = pneg %p307
        $region86: #{tpu_custom_call.1} parent=55 // pred_check_branch
          %758 = sbr.rel (%p756) target = $region88
        $region87: #{tpu_custom_call.1} parent=55 // pred_region
          %760 = vsyncadd %s729, 0
          %s761 = smul.addr %s41, 4
          %s762 = sadd.s32 %s42, %s761
          %s763 = smul.addr %s762, 8
          %s764 = scalar_lea.hbm %s10, %s763
          %s765 = sshll.u32 %s732, 4
          %s766 = int_to_ptr.vmem [resolvable:$true] %s765
          %s767 = sshll.u32 %s764, 4
          %s768 = int_to_ptr.hbm [resolvable:$true] %s767
          %773 = dma.vmem_to_hbm [thread:$0]  %s766, 512, %s768, %s729, 128, 128, 8
        $region88: #{tpu_custom_call.1} parent=55 // pred_fallthru
          _
        // Predicated region
        $region89: #{tpu_custom_call.1} parent=55 // pred_check
          %p774 = pneg %p335
        $region90: #{tpu_custom_call.1} parent=55 // pred_check_branch
          %776 = sbr.rel (%p774) target = $region92
        $region91: #{tpu_custom_call.1} parent=55 // pred_region
          %778 = vsyncadd %s734, 0
          %s779 = smul.addr %s41, 4
          %s780 = sadd.s32 %s42, %s779
          %s781 = smul.addr %s780, 8
          %s782 = scalar_lea.hbm %s11, %s781
          %s783 = sshll.u32 %s737, 4
          %s784 = int_to_ptr.vmem [resolvable:$true] %s783
          %s785 = sshll.u32 %s782, 4
          %s786 = int_to_ptr.hbm [resolvable:$true] %s785
          %791 = dma.vmem_to_hbm [thread:$0]  %s784, 512, %s786, %s734, 128, 128, 8
        $region92: #{tpu_custom_call.1} parent=55 // pred_fallthru
          _
      $region56: #{tpu_custom_call.1} parent=5 // pred_fallthru
        _
      %p792 = scmp.le.s32.totalorder 2, %s32
      // Predicated region
      $region93: #{tpu_custom_call.1} parent=5 // pred_check
        %p793 = pneg %p792
      $region94: #{tpu_custom_call.1} parent=5 // pred_check_branch
        %795 = sbr.rel (%p793) target = $region96
      $region95: #{tpu_custom_call.1} parent=5 // pred_region
        %s796 = ssub.s32 %s32, 2
        // Predicated region
        $region97: #{tpu_custom_call.1} parent=95 // pred_check
          %p797 = pneg %p285
        $region98: #{tpu_custom_call.1} parent=95 // pred_check_branch
          %799 = sbr.rel (%p797) target = $region100
        $region99: #{tpu_custom_call.1} parent=95 // pred_region
          %s800 = sand.u32 %s270, 1
          %s801 = scalar_lea.sflag [#allocation4], %s800
          %s802 = sand.u32 %s270, 1
          %s803 = smul.addr %s802, 32
          %s804 = scalar_lea.vmem [#allocation13], %s803
          %806 = dma.done %s801, 512
        $region100: #{tpu_custom_call.1} parent=95 // pred_fallthru
          _
        // Predicated region
        $region101: #{tpu_custom_call.1} parent=95 // pred_check
          %p807 = pneg %p313
        $region102: #{tpu_custom_call.1} parent=95 // pred_check_branch
          %809 = sbr.rel (%p807) target = $region104
        $region103: #{tpu_custom_call.1} parent=95 // pred_region
          %s810 = sand.u32 %s38, 1
          %s811 = scalar_lea.sflag [#allocation15], %s810
          %s812 = sand.u32 %s298, 1
          %s813 = smul.addr %s812, 32
          %s814 = scalar_lea.vmem [#allocation14], %s813
          %816 = dma.done %s811, 512
        $region104: #{tpu_custom_call.1} parent=95 // pred_fallthru
          _
        // Predicated region
        $region105: #{tpu_custom_call.1} parent=95 // pred_check
          %p817 = pneg %p341
        $region106: #{tpu_custom_call.1} parent=95 // pred_check_branch
          %819 = sbr.rel (%p817) target = $region108
        $region107: #{tpu_custom_call.1} parent=95 // pred_region
          %s820 = sand.u32 %s38, 1
          %s821 = scalar_lea.sflag [#allocation15], %s820
          %s822 = sand.u32 %s326, 1
          %s823 = smul.addr %s822, 32
          %s824 = scalar_lea.vmem [#allocation16], %s823
          %826 = dma.done %s821, 512
        $region108: #{tpu_custom_call.1} parent=95 // pred_fallthru
          _
      $region96: #{tpu_custom_call.1} parent=5 // pred_fallthru
        _
    $region6: #{tpu_custom_call.1} parent=1 // loop_footer
      %s36 = sadd.s32 1, %s32
    $region7: #{tpu_custom_call.1} parent=1 // loop_footer_branch
      %31 = sbr.rel target = $region3
    $region8: #{tpu_custom_call.1} parent=1 // loop_exit
      _
    %827 = vsyncpa [#allocation3], 1
    %s828 = scalar_lea.sflag [#allocation3], 1
    %829 = vsyncpa %s828, 1
    %830 = vsyncpa [#allocation6], 1
    %s831 = scalar_lea.sflag [#allocation6], 1
    %832 = vsyncpa %s831, 1
    %833 = vsyncpa [#allocation9], 1
    %834 = vsyncpa [#allocation12], 1
    %835 = vsyncpa [#allocation4], 1
    %s836 = scalar_lea.sflag [#allocation4], 1
    %837 = vsyncpa %s836, 1
    %838 = vsyncpa [#allocation15], 1
    %s839 = scalar_lea.sflag [#allocation15], 1
    %840 = vsyncpa %s839, 1

</llo_original>
